<compile_context>
chip_gen: v6e
topology: v6e:2x2x1
jax: 0.10.0
libtpu: 0.0.40
codegen_flags: <defaults>
</compile_context>

<pallas_src>
import functools

import numpy as np
import jax
import jax.numpy as jnp
from jax import lax
from jax.experimental import pallas as pl
from jax.experimental.pallas import tpu as pltpu


def _conv_im2col_kernel(x_ref, w_ref, b_ref, o_ref, *, Hr, Wr, C_in, C_mid, K, mm_dtype):
    # x_ref: (C_in, Hr*Wr)        flattened spatial, lane-dense
    # w_ref: (C_mid, K*K*C_in)    columns ordered (kh, kw, ci)
    # b_ref: (C_mid, 1)
    # o_ref: (C_mid, Hr*Wr)
    p = (K - 1) // 2
    L = Hr * Wr
    off = p * Wr + p                       # largest |flat tap offset|

    x = x_ref[...]                         # (C_in, L)
    if off > 0:
        zext = jnp.zeros((C_in, off), dtype=x.dtype)
        xw = jnp.concatenate([zext, x, zext], axis=1)   # (C_in, L + 2*off)
    else:
        xw = x

    # Column (w) coordinate of every flat output position; used to mask the
    # left/right 'same'-padding halo (the top/bottom halo reads the zero
    # extension, so it needs no mask).
    idx = lax.broadcasted_iota(jnp.int32, (C_in, L), 1)
    if (Wr & (Wr - 1)) == 0:               # power-of-two width: use bitwise AND
        col = jnp.bitwise_and(idx, Wr - 1)
    else:
        col = idx % Wr

    taps = []
    for kh in range(K):
        for kw in range(K):
            d = (kh - p) * Wr + (kw - p)             # static flat offset of this tap
            tap = xw[:, off + d: off + d + L]        # contiguous lane slice (C_in, L)
            if kw != p:                              # only W-edge taps need masking
                cc = col + (kw - p)
                tap = jnp.where((cc >= 0) & (cc < Wr), tap, 0.0)
            taps.append(tap)

    # im2col RHS and a single MXU matmul with contraction dim K*K*C_in.
    rhs = jnp.concatenate(taps, axis=0).astype(mm_dtype)          # (K*K*C_in, L)
    acc = jnp.dot(w_ref[...], rhs, preferred_element_type=jnp.float32)  # (C_mid, L)
    # Single bias add on the f32 accumulator (nothing to save by pre-initializing,
    # since there is only one matmul now).
    o_ref[...] = (acc + b_ref[...]).astype(o_ref.dtype)


def conv_pixel_unshuffle_downsample(x, weight, bias, factor, *, mm_dtype=jnp.bfloat16):
    """x: (N, C_in, H*r, W*r); weight: (C_mid, C_in, K, K); bias: (C_mid,).

    Returns (N, C_mid * r * r, H, W) == F.pixel_unshuffle(conv_same(x), factor).
    mm_dtype controls the MXU operand dtype (bf16 recommended on v6e/v7x);
    accumulation is always f32.
    """
    N, C_in, Hr, Wr = x.shape
    C_mid, C_in_w, K, K2 = weight.shape
    assert C_in_w == C_in and K == K2
    assert K % 2 == 1, "PyTorch-'same' parity implemented for odd kernel sizes only"
    assert Hr % factor == 0 and Wr % factor == 0, "pixel_unshuffle needs divisible dims"

    L = Hr * Wr
    x_flat = x.reshape(N, C_in, L)                        # merges minor dims (free)
    # weight -> (C_mid, K*K*C_in), column order (kh, kw, ci) matching im2col rows.
    w2d = jnp.transpose(weight, (0, 2, 3, 1)).reshape(C_mid, K * K * C_in).astype(mm_dtype)
    b2d = bias.reshape(C_mid, 1).astype(jnp.float32)

    kernel = functools.partial(_conv_im2col_kernel, Hr=Hr, Wr=Wr, C_in=C_in,
                               C_mid=C_mid, K=K, mm_dtype=mm_dtype)

    conv_flat = pl.pallas_call(
        kernel,
        out_shape=jax.ShapeDtypeStruct((N, C_mid, L), jnp.float32),
        grid_spec=pltpu.PrefetchScalarGridSpec(
            num_scalar_prefetch=0,
            grid=(N,),                                    # N>=2 keeps both v7x TCs busy
            in_specs=[
                pl.BlockSpec((None, C_in, L), lambda n: (n, 0, 0)),
                pl.BlockSpec((C_mid, K * K * C_in), lambda n: (0, 0)),
                pl.BlockSpec((C_mid, 1), lambda n: (0, 0)),
            ],
            out_specs=pl.BlockSpec((None, C_mid, L), lambda n: (n, 0, 0)),
        ),
        compiler_params=pltpu.CompilerParams(dimension_semantics=("parallel",)),
    )(x_flat, w2d, b2d)

    # pixel_unshuffle: out[n, c*r*r + i*r + j, h, w] = conv[n, c, h*r + i, w*r + j]
    # Kept outside the kernel so the kernel's store stays lane-dense (256-wide).
    # TODO(synk): at production image sizes, add a row-block grid axis sized for
    # v7x's 64 MiB VMEM (set vmem_limit_bytes) and consider bf16 activations in HBM.
    r = factor
    Ho, Wo = Hr // r, Wr // r
    y = conv_flat.reshape(N, C_mid, Ho, r, Wo, r)
    y = jnp.transpose(y, (0, 1, 3, 5, 2, 4))
    return y.reshape(N, C_mid * r * r, Ho, Wo)


def _reference(x, weight, bias, factor):
    """Pure-JAX reference (conv 'SAME' + pixel_unshuffle)."""
    conv = lax.conv_general_dilated(
        x.astype(jnp.float32), weight.astype(jnp.float32),
        window_strides=(1, 1), padding="SAME",
        dimension_numbers=("NCHW", "OIHW", "NCHW"),
        precision=lax.Precision.HIGHEST)
    conv = conv + bias.astype(jnp.float32)[None, :, None, None]
    N, C_mid, Hr, Wr = conv.shape
    r = factor
    Ho, Wo = Hr // r, Wr // r
    y = conv.reshape(N, C_mid, Ho, r, Wo, r)
    y = jnp.transpose(y, (0, 1, 3, 5, 2, 4))
    return y.reshape(N, C_mid * r * r, Ho, Wo)


if __name__ == "__main__":
    # Module config: in_channels=4, out_channels=16, kernel_size=3, factor=2
    # -> conv produces out_channels // factor**2 = 4 channels, unshuffle -> 16.
    in_channels, out_channels, kernel_size, factor = 4, 16, 3, 2
    c_mid = out_channels // (factor ** 2)

    key = jax.random.PRNGKey(0)
    kx, kw, kb = jax.random.split(key, 3)

    x = jax.random.normal(kx, (2, in_channels, 16, 16), dtype=jnp.float32)
    fan_in = in_channels * kernel_size * kernel_size
    bound = 1.0 / np.sqrt(fan_in)
    weight = jax.random.uniform(kw, (c_mid, in_channels, kernel_size, kernel_size),
                                minval=-bound, maxval=bound, dtype=jnp.float32)
    bias = jax.random.uniform(kb, (c_mid,), minval=-bound, maxval=bound,
                              dtype=jnp.float32)

    ref = jax.block_until_ready(_reference(x, weight, bias, factor))

    # Exact-precision path (f32 MXU operands): parity with the f32 PyTorch module.
    out_f32 = jax.block_until_ready(
        conv_pixel_unshuffle_downsample(x, weight, bias, factor, mm_dtype=jnp.float32))
    assert out_f32.shape == (2, out_channels, 8, 8), out_f32.shape
    assert np.allclose(np.asarray(out_f32), np.asarray(ref), atol=1e-3, rtol=1e-3), \
        "f32 kernel mismatch vs JAX reference conv + pixel_unshuffle"

    # bf16-matmul path (v6e/v7x recommendation: bf16 MXU operands, f32 accumulation).
    out_bf16 = jax.block_until_ready(
        conv_pixel_unshuffle_downsample(x, weight, bias, factor, mm_dtype=jnp.bfloat16))
    assert out_bf16.shape == (2, out_channels, 8, 8), out_bf16.shape
    assert np.allclose(np.asarray(out_bf16), np.asarray(ref), atol=5e-2, rtol=5e-2), \
        "bf16-matmul kernel drifted too far from the f32 reference"

    print("KERNEL_OK")
</pallas_src>

<mosaic_0001>
module attributes {stable_mosaic.version = 11 : i64} {
  func.func @_conv_im2col_kernel(%arg0: i32, %arg1: memref<1x4x256xf32, #tpu.memory_space<vmem>>, %arg2: memref<4x36xf32, #tpu.memory_space<vmem>>, %arg3: memref<4x1xf32, #tpu.memory_space<vmem>>, %arg4: memref<1x4x256xf32, #tpu.memory_space<vmem>>) attributes {dimension_semantics = [#tpu.dimension_semantics<parallel>], iteration_bounds = array<i64: 2>, scalar_prefetch = 0 : i64, scratch_operands = 0 : i64, tpu.core_type = #tpu.core_type<tc>, window_params = [{transform_indices = @transform_0, window_bounds = array<i64: 1, 4, 256>}, {pipeline_mode = #tpu.pipeline_mode<synchronous>, transform_indices = @transform_1, window_bounds = array<i64: 4, 36>}, {pipeline_mode = #tpu.pipeline_mode<synchronous>, transform_indices = @transform_2, window_bounds = array<i64: 4, 1>}, {transform_indices = @transform_3, window_bounds = array<i64: 1, 4, 256>}]} {
    %c0 = arith.constant 0 : index
    %c0_0 = arith.constant 0 : index
    %c0_1 = arith.constant 0 : index
    %0 = vector.load %arg1[%c0, %c0_0, %c0_1] : memref<1x4x256xf32, #tpu.memory_space<vmem>>, vector<1x4x256xf32>
    %1 = vector.shape_cast %0 : vector<1x4x256xf32> to vector<4x256xf32>
    %cst = arith.constant 0.000000e+00 : f32
    %2 = vector.broadcast %cst : f32 to vector<4x17xf32>
    %3 = tpu.concatenate %2, %1, %2 in 1 : vector<4x17xf32>, vector<4x256xf32>, vector<4x17xf32> -> vector<4x290xf32>
    %4 = tpu.iota {dimensions = array<i32: 1>} : vector<4x256xi32>
    %c15_i32 = arith.constant 15 : i32
    %5 = vector.broadcast %c15_i32 : i32 to vector<4x256xi32>
    %6 = arith.andi %4, %5 : vector<4x256xi32>
    %7 = vector.extract_strided_slice %3 {offsets = [0, 0], sizes = [4, 256], strides = [1, 1]} : vector<4x290xf32> to vector<4x256xf32>
    %c-1_i32 = arith.constant -1 : i32
    %8 = vector.broadcast %c-1_i32 : i32 to vector<4x256xi32>
    %9 = arith.addi %6, %8 : vector<4x256xi32>
    %c0_i32 = arith.constant 0 : i32
    %10 = vector.broadcast %c0_i32 : i32 to vector<4x256xi32>
    %11 = arith.cmpi sge, %9, %10 : vector<4x256xi32>
    %c16_i32 = arith.constant 16 : i32
    %12 = vector.broadcast %c16_i32 : i32 to vector<4x256xi32>
    %13 = arith.cmpi slt, %9, %12 : vector<4x256xi32>
    %14 = arith.andi %11, %13 : vector<4x256xi1>
    %cst_2 = arith.constant 0.000000e+00 : f32
    %15 = vector.broadcast %cst_2 : f32 to vector<4x256xf32>
    %16 = arith.select %14, %7, %15 : vector<4x256xi1>, vector<4x256xf32>
    %17 = vector.extract_strided_slice %3 {offsets = [0, 1], sizes = [4, 256], strides = [1, 1]} : vector<4x290xf32> to vector<4x256xf32>
    %18 = vector.extract_strided_slice %3 {offsets = [0, 2], sizes = [4, 256], strides = [1, 1]} : vector<4x290xf32> to vector<4x256xf32>
    %c1_i32 = arith.constant 1 : i32
    %19 = vector.broadcast %c1_i32 : i32 to vector<4x256xi32>
    %20 = arith.addi %6, %19 : vector<4x256xi32>
    %c0_i32_3 = arith.constant 0 : i32
    %21 = vector.broadcast %c0_i32_3 : i32 to vector<4x256xi32>
    %22 = arith.cmpi sge, %20, %21 : vector<4x256xi32>
    %c16_i32_4 = arith.constant 16 : i32
    %23 = vector.broadcast %c16_i32_4 : i32 to vector<4x256xi32>
    %24 = arith.cmpi slt, %20, %23 : vector<4x256xi32>
    %25 = arith.andi %22, %24 : vector<4x256xi1>
    %cst_5 = arith.constant 0.000000e+00 : f32
    %26 = vector.broadcast %cst_5 : f32 to vector<4x256xf32>
    %27 = arith.select %25, %18, %26 : vector<4x256xi1>, vector<4x256xf32>
    %28 = vector.extract_strided_slice %3 {offsets = [0, 16], sizes = [4, 256], strides = [1, 1]} : vector<4x290xf32> to vector<4x256xf32>
    %c-1_i32_6 = arith.constant -1 : i32
    %29 = vector.broadcast %c-1_i32_6 : i32 to vector<4x256xi32>
    %30 = arith.addi %6, %29 : vector<4x256xi32>
    %c0_i32_7 = arith.constant 0 : i32
    %31 = vector.broadcast %c0_i32_7 : i32 to vector<4x256xi32>
    %32 = arith.cmpi sge, %30, %31 : vector<4x256xi32>
    %c16_i32_8 = arith.constant 16 : i32
    %33 = vector.broadcast %c16_i32_8 : i32 to vector<4x256xi32>
    %34 = arith.cmpi slt, %30, %33 : vector<4x256xi32>
    %35 = arith.andi %32, %34 : vector<4x256xi1>
    %cst_9 = arith.constant 0.000000e+00 : f32
    %36 = vector.broadcast %cst_9 : f32 to vector<4x256xf32>
    %37 = arith.select %35, %28, %36 : vector<4x256xi1>, vector<4x256xf32>
    %38 = vector.extract_strided_slice %3 {offsets = [0, 17], sizes = [4, 256], strides = [1, 1]} : vector<4x290xf32> to vector<4x256xf32>
    %39 = vector.extract_strided_slice %3 {offsets = [0, 18], sizes = [4, 256], strides = [1, 1]} : vector<4x290xf32> to vector<4x256xf32>
    %c1_i32_10 = arith.constant 1 : i32
    %40 = vector.broadcast %c1_i32_10 : i32 to vector<4x256xi32>
    %41 = arith.addi %6, %40 : vector<4x256xi32>
    %c0_i32_11 = arith.constant 0 : i32
    %42 = vector.broadcast %c0_i32_11 : i32 to vector<4x256xi32>
    %43 = arith.cmpi sge, %41, %42 : vector<4x256xi32>
    %c16_i32_12 = arith.constant 16 : i32
    %44 = vector.broadcast %c16_i32_12 : i32 to vector<4x256xi32>
    %45 = arith.cmpi slt, %41, %44 : vector<4x256xi32>
    %46 = arith.andi %43, %45 : vector<4x256xi1>
    %cst_13 = arith.constant 0.000000e+00 : f32
    %47 = vector.broadcast %cst_13 : f32 to vector<4x256xf32>
    %48 = arith.select %46, %39, %47 : vector<4x256xi1>, vector<4x256xf32>
    %49 = vector.extract_strided_slice %3 {offsets = [0, 32], sizes = [4, 256], strides = [1, 1]} : vector<4x290xf32> to vector<4x256xf32>
    %c-1_i32_14 = arith.constant -1 : i32
    %50 = vector.broadcast %c-1_i32_14 : i32 to vector<4x256xi32>
    %51 = arith.addi %6, %50 : vector<4x256xi32>
    %c0_i32_15 = arith.constant 0 : i32
    %52 = vector.broadcast %c0_i32_15 : i32 to vector<4x256xi32>
    %53 = arith.cmpi sge, %51, %52 : vector<4x256xi32>
    %c16_i32_16 = arith.constant 16 : i32
    %54 = vector.broadcast %c16_i32_16 : i32 to vector<4x256xi32>
    %55 = arith.cmpi slt, %51, %54 : vector<4x256xi32>
    %56 = arith.andi %53, %55 : vector<4x256xi1>
    %cst_17 = arith.constant 0.000000e+00 : f32
    %57 = vector.broadcast %cst_17 : f32 to vector<4x256xf32>
    %58 = arith.select %56, %49, %57 : vector<4x256xi1>, vector<4x256xf32>
    %59 = vector.extract_strided_slice %3 {offsets = [0, 33], sizes = [4, 256], strides = [1, 1]} : vector<4x290xf32> to vector<4x256xf32>
    %60 = vector.extract_strided_slice %3 {offsets = [0, 34], sizes = [4, 256], strides = [1, 1]} : vector<4x290xf32> to vector<4x256xf32>
    %c1_i32_18 = arith.constant 1 : i32
    %61 = vector.broadcast %c1_i32_18 : i32 to vector<4x256xi32>
    %62 = arith.addi %6, %61 : vector<4x256xi32>
    %c0_i32_19 = arith.constant 0 : i32
    %63 = vector.broadcast %c0_i32_19 : i32 to vector<4x256xi32>
    %64 = arith.cmpi sge, %62, %63 : vector<4x256xi32>
    %c16_i32_20 = arith.constant 16 : i32
    %65 = vector.broadcast %c16_i32_20 : i32 to vector<4x256xi32>
    %66 = arith.cmpi slt, %62, %65 : vector<4x256xi32>
    %67 = arith.andi %64, %66 : vector<4x256xi1>
    %cst_21 = arith.constant 0.000000e+00 : f32
    %68 = vector.broadcast %cst_21 : f32 to vector<4x256xf32>
    %69 = arith.select %67, %60, %68 : vector<4x256xi1>, vector<4x256xf32>
    %70 = tpu.concatenate %16, %17, %27, %37, %38, %48, %58, %59, %69 in 0 : vector<4x256xf32>, vector<4x256xf32>, vector<4x256xf32>, vector<4x256xf32>, vector<4x256xf32>, vector<4x256xf32>, vector<4x256xf32>, vector<4x256xf32>, vector<4x256xf32> -> vector<36x256xf32>
    %c0_22 = arith.constant 0 : index
    %c0_23 = arith.constant 0 : index
    %71 = vector.load %arg2[%c0_22, %c0_23] : memref<4x36xf32, #tpu.memory_space<vmem>>, vector<4x36xf32>
    %cst_24 = arith.constant dense<0.000000e+00> : vector<4x256xf32>
    %72 = tpu.matmul %71, %70, %cst_24 {dimension_numbers = #tpu.dot_dimension_numbers<[1], [0], [0], [1], [0, 0, 1, 1], [], []>} : vector<4x36xf32>, vector<36x256xf32>, vector<4x256xf32> -> vector<4x256xf32>
    %c0_25 = arith.constant 0 : index
    %c0_26 = arith.constant 0 : index
    %73 = vector.load %arg3[%c0_25, %c0_26] : memref<4x1xf32, #tpu.memory_space<vmem>>, vector<4x1xf32>
    %74 = vector.broadcast %73 : vector<4x1xf32> to vector<4x256xf32>
    %75 = arith.addf %72, %74 : vector<4x256xf32>
    %c0_27 = arith.constant 0 : index
    %c0_28 = arith.constant 0 : index
    %c0_29 = arith.constant 0 : index
    %76 = vector.load %arg4[%c0_27, %c0_28, %c0_29] : memref<1x4x256xf32, #tpu.memory_space<vmem>>, vector<1x4x256xf32>
    %77 = vector.shape_cast %76 : vector<1x4x256xf32> to vector<4x256xf32>
    %78 = vector.shape_cast %75 : vector<4x256xf32> to vector<1x4x256xf32>
    tpu.vector_store %arg4[%c0_27, %c0_28, %c0_29], %78 {strides = array<i32>} : memref<1x4x256xf32, #tpu.memory_space<vmem>>, vector<1x4x256xf32>,
    return
  }
  func.func @transform_0(%arg0: i32) -> (i32, i32, i32) {
    %c0_i32 = arith.constant 0 : i32
    %c0_i32_0 = arith.constant 0 : i32
    %c0_i32_1 = arith.constant 0 : i32
    return %arg0, %c0_i32, %c0_i32_0 : i32, i32, i32
  }
  func.func @transform_1(%arg0: i32) -> (i32, i32) {
    %c0_i32 = arith.constant 0 : i32
    %c0_i32_0 = arith.constant 0 : i32
    %c0_i32_1 = arith.constant 0 : i32
    return %c0_i32, %c0_i32_0 : i32, i32
  }
  func.func @transform_2(%arg0: i32) -> (i32, i32) {
    %c0_i32 = arith.constant 0 : i32
    %c0_i32_0 = arith.constant 0 : i32
    %c0_i32_1 = arith.constant 0 : i32
    return %c0_i32, %c0_i32_0 : i32, i32
  }
  func.func @transform_3(%arg0: i32) -> (i32, i32, i32) {
    %c0_i32 = arith.constant 0 : i32
    %c0_i32_0 = arith.constant 0 : i32
    %c0_i32_1 = arith.constant 0 : i32
    return %arg0, %c0_i32, %c0_i32_0 : i32, i32, i32
  }
}

</mosaic_0001>

<llo_original>
// kernel: tpu_custom_call.1
$region0: #{tpu_custom_call.1}
  #allocation0 [shape = 'u32[]', space=smem, size = 0x4, offset = 0x4, fixed_abs, tag = 'smem constant byte address 0x4 - core index']
  #allocation1 [shape = 'u32[144,128]{1,0:T(1,128)}', space=vmem, size = 0x12000, scoped, tag = 'internal scratch']
  %s0 = inlined_call_operand.hbm [shape: f32[2,4,256], index: 0, kind: input, shape index: {}]
  %s1 = inlined_call_operand.vmem [shape: f32[4,36], index: 1, kind: input, shape index: {}]
  %s2 = inlined_call_operand.vmem [shape: f32[4,1], index: 2, kind: input, shape index: {}]
  %s3 = inlined_call_operand.hbm [shape: f32[2,4,256], index: 3, kind: output, shape index: {}]
  %s4 = sld [smem:[#allocation0]]
  $region49: #{tpu_custom_call.1} parent=0
    _
  %s6 = ssub.s32 1, %s4
  %s7 = scalar_select 0, %s6, %s4
  $region1: #{tpu_custom_call.1} parent=0
    #allocation2 [shape = 'u8[8192]{0}', space=vmem, size = 0x2000, scoped, tag = 'input window, operand 0']
    #allocation3 [shape = 's32[2]{0}', space=sflag, size = 0x8, scoped, tag = 'scoped memory for tpu_custom_call.1']
    #allocation4 [shape = 's32[2]{0}', space=sflag, size = 0x8, scoped, tag = 'scoped memory for tpu_custom_call.1']
    #allocation5 [shape = 'u8[8192]{0}', space=vmem, size = 0x2000, scoped, tag = 'output window, operand 0']
    %8 = vsyncpa [#allocation3], 0
    %s9 = scalar_lea.sflag [#allocation3], 1
    %10 = vsyncpa %s9, 0
    %11 = vsyncpa [#allocation4], 0
    %s12 = scalar_lea.sflag [#allocation4], 1
    %13 = vsyncpa %s12, 0
    loop: start=0, step=1, limit=4
    $region2: #{tpu_custom_call.1} parent=1 // loop_pre_header
      _
    $region3: #{tpu_custom_call.1} parent=1 // loop_header
      %s15 = sphi 0, %s19
      %p16 = scmp.ge.s32.totalorder %s15, 4
      %s25 = sphi 0, %s27
      %s28 = sphi 0, %s25
      %s29 = sphi 0, %s28
      %s45 = sphi 0, %s29
      %s49 = sphi 0, %s49
      %s51 = sphi 0, %s49
      %s52 = sphi 0, %s51
      %s66 = sphi 0, %s52
      %s70 = sphi 0, %s70
      %s72 = sphi 0, %s70
      %s73 = sphi 0, %s72
      %s87 = sphi 0, %s73
      %s93 = sphi 0, %s95
      %s96 = sphi 0, %s93
      %s97 = sphi 0, %s96
      %s113 = sphi 0, %s97
    $region4: #{tpu_custom_call.1} parent=1 // loop_header_branch
      %18 = sbr.rel (%p16) target = $region8
    $region5: #{tpu_custom_call.1} parent=1 // loop_body
      %s20 = ssub.s32 %s15, 1
      %s21 = ssub.s32 %s15, 2
      %s22 = sadd.s32 %s15, 1
      %s23 = ssub.s32 %s15, %s22
      %p24 = scmp.eq.s32.totalorder %s23, 0
      %s26 = sadd.s32 %s25, 1
      %s27 = scalar_select %p24, %s25, %s26
      %p30 = pneg %p24
      %p31 = scmp.eq.s32.totalorder %s15, 1
      %p32 = por %p30, %p31
      %p33 = scmp.ne.s32.totalorder %s25, %s28
      %p34 = scmp.eq.s32.totalorder %s15, 0
      %p35 = por %p33, %p34
      %p36 = scmp.ne.s32.totalorder %s25, %s28
      %p37 = scmp.eq.s32.totalorder %s20, 1
      %p38 = por %p36, %p37
      %p39 = scmp.ne.s32.totalorder %s28, %s29
      %p40 = scmp.eq.s32.totalorder %s20, 0
      %p41 = por %p39, %p40
      %p42 = scmp.ne.s32.totalorder %s28, %s29
      %p43 = scmp.eq.s32.totalorder %s21, 1
      %p44 = por %p42, %p43
      %p46 = scmp.ne.s32.totalorder %s29, %s45
      %p47 = scmp.eq.s32.totalorder %s21, 0
      %p48 = por %p46, %p47
      %s50 = sadd.s32 %s49, 1
      %p53 = scmp.eq.s32.totalorder %s15, 1
      %p54 = scmp.ne.s32.totalorder %s49, %s51
      %p55 = scmp.eq.s32.totalorder %s15, 0
      %p56 = por %p54, %p55
      %p57 = scmp.ne.s32.totalorder %s49, %s51
      %p58 = scmp.eq.s32.totalorder %s20, 1
      %p59 = por %p57, %p58
      %p60 = scmp.ne.s32.totalorder %s51, %s52
      %p61 = scmp.eq.s32.totalorder %s20, 0
      %p62 = por %p60, %p61
      %p63 = scmp.ne.s32.totalorder %s51, %s52
      %p64 = scmp.eq.s32.totalorder %s21, 1
      %p65 = por %p63, %p64
      %p67 = scmp.ne.s32.totalorder %s52, %s66
      %p68 = scmp.eq.s32.totalorder %s21, 0
      %p69 = por %p67, %p68
      %s71 = sadd.s32 %s70, 1
      %p74 = scmp.eq.s32.totalorder %s15, 1
      %p75 = scmp.ne.s32.totalorder %s70, %s72
      %p76 = scmp.eq.s32.totalorder %s15, 0
      %p77 = por %p75, %p76
      %p78 = scmp.ne.s32.totalorder %s70, %s72
      %p79 = scmp.eq.s32.totalorder %s20, 1
      %p80 = por %p78, %p79
      %p81 = scmp.ne.s32.totalorder %s72, %s73
      %p82 = scmp.eq.s32.totalorder %s20, 0
      %p83 = por %p81, %p82
      %p84 = scmp.ne.s32.totalorder %s72, %s73
      %p85 = scmp.eq.s32.totalorder %s21, 1
      %p86 = por %p84, %p85
      %p88 = scmp.ne.s32.totalorder %s73, %s87
      %p89 = scmp.eq.s32.totalorder %s21, 0
      %p90 = por %p88, %p89
      %s91 = ssub.s32 %s15, %s22
      %p92 = scmp.eq.s32.totalorder %s91, 0
      %s94 = sadd.s32 %s93, 1
      %s95 = scalar_select %p92, %s93, %s94
      %p98 = pneg %p92
      %p99 = scmp.eq.s32.totalorder %s15, 1
      %p100 = por %p98, %p99
      %p101 = scmp.ne.s32.totalorder %s93, %s96
      %p102 = scmp.eq.s32.totalorder %s15, 0
      %p103 = por %p101, %p102
      %p104 = scmp.ne.s32.totalorder %s93, %s96
      %p105 = scmp.eq.s32.totalorder %s20, 1
      %p106 = por %p104, %p105
      %p107 = scmp.ne.s32.totalorder %s96, %s97
      %p108 = scmp.eq.s32.totalorder %s20, 0
      %p109 = por %p107, %p108
      %p110 = scmp.ne.s32.totalorder %s96, %s97
      %p111 = scmp.eq.s32.totalorder %s21, 1
      %p112 = por %p110, %p111
      %p114 = scmp.ne.s32.totalorder %s97, %s113
      %p115 = scmp.eq.s32.totalorder %s21, 0
      %p116 = por %p114, %p115
      %p117 = scmp.le.s32.totalorder 1, %s15
      %p118 = scmp.lt.s32.totalorder %s15, 3
      %p119 = pnand %p117, %p118
      %p120 = pneg %p119
      // Predicated region
      $region9: #{tpu_custom_call.1} parent=5 // pred_check
        _
      $region10: #{tpu_custom_call.1} parent=5 // pred_check_branch
        %122 = sbr.rel (%p119) target = $region12
      $region11: #{tpu_custom_call.1} parent=5 // pred_region
        %s123 = ssub.s32 %s15, 1
        // Predicated region
        $region13: #{tpu_custom_call.1} parent=11 // pred_check
          %p124 = pneg %p62
        $region14: #{tpu_custom_call.1} parent=11 // pred_check_branch
          %126 = sbr.rel (%p124) target = $region16
        $region15: #{tpu_custom_call.1} parent=11 // pred_region
          _
        $region16: #{tpu_custom_call.1} parent=11 // pred_fallthru
          _
        // Predicated region
        $region17: #{tpu_custom_call.1} parent=11 // pred_check
          %p127 = pneg %p83
        $region18: #{tpu_custom_call.1} parent=11 // pred_check_branch
          %129 = sbr.rel (%p127) target = $region20
        $region19: #{tpu_custom_call.1} parent=11 // pred_region
          _
        $region20: #{tpu_custom_call.1} parent=11 // pred_fallthru
          _
      $region12: #{tpu_custom_call.1} parent=5 // pred_fallthru
        _
      %p130 = scmp.lt.s32.totalorder %s15, 2
      // Predicated region
      $region21: #{tpu_custom_call.1} parent=5 // pred_check
        %p131 = pneg %p130
      $region22: #{tpu_custom_call.1} parent=5 // pred_check_branch
        %133 = sbr.rel (%p131) target = $region24
      $region23: #{tpu_custom_call.1} parent=5 // pred_region
        // Predicated region
        $region25: #{tpu_custom_call.1} parent=23 // pred_check
          %p134 = pneg %p35
        $region26: #{tpu_custom_call.1} parent=23 // pred_check_branch
          %136 = sbr.rel (%p134) target = $region28
        $region27: #{tpu_custom_call.1} parent=23 // pred_region
          %s137 = sand.u32 %s25, 1
          %s138 = scalar_lea.sflag [#allocation3], %s137
          %s139 = sand.u32 %s25, 1
          %s140 = smul.addr %s139, 8
          %s141 = scalar_lea.vmem [#allocation2], %s140
          %s143 = ssub.s32 128, 128
          %144 = vsyncadd %s138, %s143
          %s145 = smul.addr %s15, 2
          %s146 = smul.addr %s145, 64
          %s147 = scalar_lea.hbm %s0, %s146
          %s149 = sshll.u32 %s141, 4
          %s150 = int_to_ptr.vmem [resolvable:$true] %s149
          %152 = dma.hbm_to_vmem [thread:$0]  %s147, 128, %s150, %s138
        $region28: #{tpu_custom_call.1} parent=23 // pred_fallthru
          _
      $region24: #{tpu_custom_call.1} parent=5 // pred_fallthru
        _
      %p153 = scmp.le.s32.totalorder 1, %s15
      %p154 = scmp.lt.s32.totalorder %s15, 3
      %p155 = pnand %p153, %p154
      %p156 = pneg %p155
      // Predicated region
      $region29: #{tpu_custom_call.1} parent=5 // pred_check
        _
      $region30: #{tpu_custom_call.1} parent=5 // pred_check_branch
        %158 = sbr.rel (%p155) target = $region32
      $region31: #{tpu_custom_call.1} parent=5 // pred_region
        %s159 = ssub.s32 %s15, 1
        %s160 = sand.u32 %s28, 1
        %s161 = scalar_lea.sflag [#allocation3], %s160
        %s162 = sand.u32 %s28, 1
        %s163 = smul.addr %s162, 8
        %s164 = scalar_lea.vmem [#allocation2], %s163
        // Predicated region
        $region33: #{tpu_custom_call.1} parent=31 // pred_check
          %p165 = pneg %p41
        $region34: #{tpu_custom_call.1} parent=31 // pred_check_branch
          %167 = sbr.rel (%p165) target = $region36
        $region35: #{tpu_custom_call.1} parent=31 // pred_region
          %168 = dma.done %s161, 128
        $region36: #{tpu_custom_call.1} parent=31 // pred_fallthru
          _
        %s169 = sand.u32 %s28, 1
        %s170 = scalar_lea.sflag [#allocation3], %s169
        %s171 = sand.u32 %s28, 1
        %s172 = smul.addr %s171, 8
        %s173 = scalar_lea.vmem [#allocation2], %s172
        %p174 = pneg %p41
        %p175 = pneg %p38
        %p176 = pneg %p62
        %p177 = pneg %p59
        %p178 = pneg %p83
        %p179 = pneg %p80
        %p180 = pneg %p109
        %p181 = pneg %p106
        %s182 = sand.u32 %s96, 1
        %s183 = scalar_lea.sflag [#allocation4], %s182
        %s184 = sand.u32 %s96, 1
        %s185 = smul.addr %s184, 8
        %s186 = scalar_lea.vmem [#allocation5], %s185
        %v187 = vld [vmem:[%s164] sm:$0xff]
        %v189 = vcombine.high %v187, %v187
        %190 = vrot.lane.b32.xlu0 %v187, 17
        %v191 = vpop.permute.xlu0 %190
        %192 = vrot.lane.b32.xlu0 %v189, 17
        %v193 = vpop.permute.xlu0 %192
        %vm194 = vcmask 138240
        %v195 = vsel %vm194, %v191, %v193
        %v199 = vsel %vm194, 0.0, %v191
        %v200 = vsel %vm194, %v193, 0.0
        %v201 = vlaneseq
        %v202 = vand.u32 %v201, 127
        %v203 = vadd.s32 %v202, 128
        %v204 = vand.u32 %v202, 15
        %v205 = vand.u32 %v203, 15
        %v206 = vadd.s32 %v204, 4294967295
        %v207 = vadd.s32 %v205, 4294967295
        %vm208 = vcmp.ge.s32.totalorder %v206, 0
        %vm209 = vcmp.ge.s32.totalorder %v207, 0
        %vm210 = vcmp.lt.s32.totalorder %v206, 16
        %vm211 = vcmp.lt.s32.totalorder %v207, 16
        %vm212 = vmand %vm208, %vm210
        %vm213 = vmand %vm209, %vm211
        %v214 = vsel %vm212, %v199, 0.0
        %v215 = vsel %vm213, %v195, 0.0
        %v216 = vadd.s32 %v204, 1
        %v217 = vadd.s32 %v205, 1
        %vm218 = vcmp.ge.s32.totalorder %v216, 0
        %vm219 = vcmp.ge.s32.totalorder %v217, 0
        %vm220 = vcmp.lt.s32.totalorder %v216, 16
        %vm221 = vcmp.lt.s32.totalorder %v217, 16
        %vm222 = vmand %vm218, %vm220
        %vm223 = vmand %vm219, %vm221
        %226 = vrot.lane.b32.xlu0 %v199, 126
        %v227 = vpop.permute.xlu0 %226
        %228 = vrot.lane.b32.xlu0 %v195, 126
        %v229 = vpop.permute.xlu0 %228
        %230 = vrot.lane.b32.xlu0 %v200, 126
        %v231 = vpop.permute.xlu0 %230
        %vm232 = vcmask 1031168
        %v233 = vsel %vm232, %v227, %v229
        %v234 = vsel %vm232, %v229, %v231
        %v237 = vsel %vm222, %v233, 0.0
        %v238 = vsel %vm223, %v234, 0.0
        %239 = vrot.lane.b32.xlu0 %v199, 112
        %v240 = vpop.permute.xlu0 %239
        %241 = vrot.lane.b32.xlu0 %v195, 112
        %v242 = vpop.permute.xlu0 %241
        %243 = vrot.lane.b32.xlu0 %v200, 112
        %v244 = vpop.permute.xlu0 %243
        %vm245 = vcmask 916480
        %v246 = vsel %vm245, %v240, %v242
        %v247 = vsel %vm245, %v242, %v244
        %v250 = vsel %vm212, %v246, 0.0
        %v251 = vsel %vm213, %v247, 0.0
        %252 = vrot.lane.b32.xlu0 %v199, 110
        %v253 = vpop.permute.xlu0 %252
        %254 = vrot.lane.b32.xlu0 %v195, 110
        %v255 = vpop.permute.xlu0 %254
        %256 = vrot.lane.b32.xlu0 %v200, 110
        %v257 = vpop.permute.xlu0 %256
        %vm258 = vcmask 900096
        %v259 = vsel %vm258, %v253, %v255
        %v260 = vsel %vm258, %v255, %v257
        %v263 = vsel %vm222, %v259, 0.0
        %v264 = vsel %vm223, %v260, 0.0
        %265 = vrot.lane.b32.xlu0 %v199, 96
        %v266 = vpop.permute.xlu0 %265
        %267 = vrot.lane.b32.xlu0 %v195, 96
        %v268 = vpop.permute.xlu0 %267
        %269 = vrot.lane.b32.xlu0 %v200, 96
        %v270 = vpop.permute.xlu0 %269
        %vm271 = vcmask 785408
        %v272 = vsel %vm271, %v266, %v268
        %v273 = vsel %vm271, %v268, %v270
        %v276 = vsel %vm212, %v272, 0.0
        %v277 = vsel %vm213, %v273, 0.0
        %278 = vrot.lane.b32.xlu0 %v199, 94
        %v279 = vpop.permute.xlu0 %278
        %280 = vrot.lane.b32.xlu0 %v195, 94
        %v281 = vpop.permute.xlu0 %280
        %282 = vrot.lane.b32.xlu0 %v200, 94
        %v283 = vpop.permute.xlu0 %282
        %vm284 = vcmask 769024
        %v285 = vsel %vm284, %v279, %v281
        %v286 = vsel %vm284, %v281, %v283
        %v289 = vsel %vm222, %v285, 0.0
        %v290 = vsel %vm223, %v286, 0.0
        %v291 = vrot.slane %v199, 4
        %v292 = vrot.slane %v195, 4
        %v293 = vrot.slane %v200, 4
        %294 = vrot.lane.b32.xlu0 %v291, 127
        %v295 = vpop.permute.xlu0 %294
        %296 = vrot.lane.b32.xlu0 %v292, 127
        %v297 = vpop.permute.xlu0 %296
        %298 = vrot.lane.b32.xlu0 %v293, 127
        %v299 = vpop.permute.xlu0 %298
        %vm300 = vcmask 1039360
        %v301 = vsel %vm300, %v295, %v297
        %v302 = vsel %vm300, %v297, %v299
        %v307 = vrot.slane %v250, 4
        %v308 = vrot.slane %v251, 4
        %311 = vrot.lane.b32.xlu0 %v199, 111
        %v312 = vpop.permute.xlu0 %311
        %313 = vrot.lane.b32.xlu0 %v195, 111
        %v314 = vpop.permute.xlu0 %313
        %315 = vrot.lane.b32.xlu0 %v200, 111
        %v316 = vpop.permute.xlu0 %315
        %vm317 = vcmask 908288
        %v318 = vsel %vm317, %v312, %v314
        %v319 = vsel %vm317, %v314, %v316
        %v324 = vrot.slane %v263, 4
        %v325 = vrot.slane %v264, 4
        %328 = vrot.lane.b32.xlu0 %v291, 95
        %v329 = vpop.permute.xlu0 %328
        %330 = vrot.lane.b32.xlu0 %v292, 95
        %v331 = vpop.permute.xlu0 %330
        %332 = vrot.lane.b32.xlu0 %v293, 95
        %v333 = vpop.permute.xlu0 %332
        %vm334 = vcmask 777216
        %v335 = vsel %vm334, %v329, %v331
        %v336 = vsel %vm334, %v331, %v333
        %vm339 = vcmask 1043456
        %v340 = vsel %vm339, %v214, %v301
        %v341 = vsel %vm339, %v215, %v302
        %v342 = vsel %vm339, %v237, %v307
        %v343 = vsel %vm339, %v238, %v308
        %v344 = vsel %vm339, %v318, %v324
        %v345 = vsel %vm339, %v319, %v325
        %v346 = vsel %vm339, %v276, %v335
        %v347 = vsel %vm339, %v277, %v336
        %v348 = vld [vmem:[%s1] sm:$0xf]
        %v349 = vld [vmem:[%s2] sm:$0xf]
        %351 = vset.pattern.permute.xlu0 0
        %352 = vperm.xlu0 %351, %v349
        %v353 = vpop.permute.xlu0 %352
        %vm355 = vcmask 293888
        %v357 = vsel %vm355, %v348, 0
        %v360 = vsel %vm339, %v289, 0
        %v363 = vsel %vm339, %v290, 0
        %365 = vmatprep.subr.mxu0 0.0
        %366 = vmatpush1.msra.mxu0 0.0
        %367 = vmatprep.subr.mxu0 0.0
        %368 = vmatpush1.msra.mxu0 0.0
        %369 = vmatprep.subr.mxu0 0.0
        %370 = vmatpush1.msra.mxu0 0.0
        %371 = vmatprep.subr.mxu0 0.0
        %372 = vmatpush1.msra.mxu0 0.0
        %373 = vmatprep.subr.mxu0 0.0
        %374 = vmatpush1.msra.mxu0 0.0
        %375 = vmatprep.subr.mxu0 0.0
        %376 = vmatpush1.msra.mxu0 0.0
        %377 = vmatprep.subr.mxu0 0.0
        %378 = vmatpush1.msra.mxu0 0.0
        %379 = vmatprep.subr.mxu0 0.0
        %380 = vmatpush1.msra.mxu0 0.0
        %381 = vmatprep.subr.mxu0 0.0
        %382 = vmatpush1.msra.mxu0 0.0
        %383 = vmatprep.subr.mxu0 0.0
        %384 = vmatpush1.msra.mxu0 0.0
        %385 = vmatprep.subr.mxu0 0.0
        %386 = vmatpush1.msra.mxu0 0.0
        %387 = vmatprep.subr.mxu0 %v363
        %388 = vmatpush1.msra.mxu0 %v360
        %389 = vmatprep.subr.mxu0 %v347
        %390 = vmatpush1.msra.mxu0 %v346
        %391 = vmatprep.subr.mxu0 %v345
        %392 = vmatpush1.msra.mxu0 %v344
        %393 = vmatprep.subr.mxu0 %v343
        %394 = vmatpush1.msra.mxu0 %v342
        %395 = vmatprep.subr.mxu0 %v341
        %396 = vmatpush1.msra.mxu0 %v340
        %397 = vmatprep.subr.mxu0 0.0
        %398 = vmatpush2.msra.mxu0 0.0
        %399 = vmatprep.subr.mxu0 0.0
        %400 = vmatpush2.msra.mxu0 0.0
        %401 = vmatprep.subr.mxu0 0.0
        %402 = vmatpush2.msra.mxu0 0.0
        %403 = vmatprep.subr.mxu0 0.0
        %404 = vmatpush2.msra.mxu0 0.0
        %405 = vmatprep.subr.mxu0 0.0
        %406 = vmatpush2.msra.mxu0 0.0
        %407 = vmatprep.subr.mxu0 0.0
        %408 = vmatpush2.msra.mxu0 0.0
        %409 = vmatprep.subr.mxu0 0.0
        %410 = vmatpush2.msra.mxu0 0.0
        %411 = vmatprep.subr.mxu0 0.0
        %412 = vmatpush2.msra.mxu0 0.0
        %413 = vmatprep.subr.mxu0 0.0
        %414 = vmatpush2.msra.mxu0 0.0
        %415 = vmatprep.subr.mxu0 0.0
        %416 = vmatpush2.msra.mxu0 0.0
        %417 = vmatprep.subr.mxu0 0.0
        %418 = vmatpush2.msra.mxu0 0.0
        %419 = vmatprep.subr.mxu0 0.0
        %420 = vmatpush2.msra.mxu0 0.0
        %421 = vmatprep.subr.mxu0 0.0
        %422 = vmatpush2.msra.mxu0 0.0
        %423 = vmatprep.subr.mxu0 0.0
        %424 = vmatpush2.msra.mxu0 0.0
        %425 = vmatprep.subr.mxu0 0.0
        %426 = vmatpush2.msra.mxu0 0.0
        %427 = vmatprep.subr.mxu0 0.0
        %428 = vmatpush2.msra.mxu0 0.0
        %429 = vmatprep.mubr.f32.mxu0 0.0
        %430 = vmatmul.mubr.f32.gmra.mxu0 %v357
        %v431 = vpop.f32.mrf.mxu0
        %v432 = vadd.f32 %v353, %v431
        %v433 = vpop.f32.mrf.mxu0
        %v434 = vadd.f32 %v353, %v433
        %435 = vdwg.mxu0
        %v438 = vcombine.low %v432, %v434
        %440 = vst [vmem:[%s186] sm:$0xff] %v438
        %s441 = sand.u32 %s96, 1
        %s442 = scalar_lea.sflag [#allocation4], %s441
        %s443 = sand.u32 %s96, 1
        %s444 = smul.addr %s443, 8
        %s445 = scalar_lea.vmem [#allocation5], %s444
        // Predicated region
        $region37: #{tpu_custom_call.1} parent=31 // pred_check
          %p446 = pneg %p106
        $region38: #{tpu_custom_call.1} parent=31 // pred_check_branch
          %448 = sbr.rel (%p446) target = $region40
        $region39: #{tpu_custom_call.1} parent=31 // pred_region
          %s450 = ssub.s32 128, 128
          %451 = vsyncadd %s442, %s450
          %s452 = smul.addr %s20, 2
          %s453 = smul.addr %s452, 64
          %s454 = scalar_lea.hbm %s3, %s453
          %s456 = sshll.u32 %s445, 4
          %s457 = int_to_ptr.vmem [resolvable:$true] %s456
          %459 = dma.vmem_to_hbm [thread:$0]  %s457, 128, %s454, %s442
        $region40: #{tpu_custom_call.1} parent=31 // pred_fallthru
          _
      $region32: #{tpu_custom_call.1} parent=5 // pred_fallthru
        _
      %p460 = scmp.le.s32.totalorder 2, %s15
      // Predicated region
      $region41: #{tpu_custom_call.1} parent=5 // pred_check
        %p461 = pneg %p460
      $region42: #{tpu_custom_call.1} parent=5 // pred_check_branch
        %463 = sbr.rel (%p461) target = $region44
      $region43: #{tpu_custom_call.1} parent=5 // pred_region
        %s464 = ssub.s32 %s15, 2
        // Predicated region
        $region45: #{tpu_custom_call.1} parent=43 // pred_check
          %p465 = pneg %p112
        $region46: #{tpu_custom_call.1} parent=43 // pred_check_branch
          %467 = sbr.rel (%p465) target = $region48
        $region47: #{tpu_custom_call.1} parent=43 // pred_region
          %s468 = sand.u32 %s97, 1
          %s469 = scalar_lea.sflag [#allocation4], %s468
          %s470 = sand.u32 %s97, 1
          %s471 = smul.addr %s470, 8
          %s472 = scalar_lea.vmem [#allocation5], %s471
          %473 = dma.done %s469, 128
        $region48: #{tpu_custom_call.1} parent=43 // pred_fallthru
          _
      $region44: #{tpu_custom_call.1} parent=5 // pred_fallthru
        _
    $region6: #{tpu_custom_call.1} parent=1 // loop_footer
      %s19 = sadd.s32 1, %s15
    $region7: #{tpu_custom_call.1} parent=1 // loop_footer_branch
      %14 = sbr.rel target = $region3
    $region8: #{tpu_custom_call.1} parent=1 // loop_exit
      _
    %474 = vsyncpa [#allocation3], 1
    %s475 = scalar_lea.sflag [#allocation3], 1
    %476 = vsyncpa %s475, 1
    %477 = vsyncpa [#allocation4], 1
    %s478 = scalar_lea.sflag [#allocation4], 1
    %479 = vsyncpa %s478, 1

</llo_original>
